<compile_context>
chip_gen: v7x
topology: tpu7x:2x2x1
jax: 0.10.0
libtpu: 0.0.40
codegen_flags: <defaults>
</compile_context>

<pallas_src>
import math
import functools

import jax
import jax.numpy as jnp
from jax.experimental import pallas as pl
from jax.experimental.pallas import tpu as pltpu


# ---------------------------------------------------------------------------
# Chip-aware configuration.
# ---------------------------------------------------------------------------
def _chip_config():
    try:
        kind = jax.devices()[0].device_kind.lower()
    except Exception:
        kind = ""
    # Conservative, known-good defaults for unknown generations.
    cfg = dict(vmem_limit=48 * 1024 * 1024, cap_a=512, cap_q=256, cap_kv=256,
               bf16_exp=False)
    if "v5" in kind:      # v5e/v5p: 128 MiB VMEM, no bf16 EUP
        cfg = dict(vmem_limit=96 * 1024 * 1024, cap_a=1024, cap_q=512,
                   cap_kv=256, bf16_exp=False)
    elif "v6" in kind:    # v6e: 128 MiB VMEM, bf16 EUP
        cfg = dict(vmem_limit=96 * 1024 * 1024, cap_a=1024, cap_q=512,
                   cap_kv=256, bf16_exp=True)
    elif "v7" in kind:    # v7x: 64 MiB VMEM / TC, bf16 EUP
        cfg = dict(vmem_limit=48 * 1024 * 1024, cap_a=256, cap_q=256,
                   cap_kv=256, bf16_exp=True)
    try:  # clamp to 3/4 of physical VMEM if the query is available
        cap = getattr(pltpu.get_tpu_info(), "vmem_capacity_bytes", None)
        if cap:
            cfg["vmem_limit"] = min(cfg["vmem_limit"], int(cap) * 3 // 4)
    except Exception:
        pass
    return cfg


def _plan_tiles(S, cfg):
    """Returns (tq_a, tq, tk, S_pad).  Full-seq blocks for small S; otherwise
    pad S to a multiple of 128 and pick multiple-of-128 divisor tiles."""
    cap_a, cap_q, cap_kv = cfg["cap_a"], cfg["cap_q"], cfg["cap_kv"]
    if S <= min(cap_a, cap_q, cap_kv):
        return S, S, S, S
    S_pad = ((S + 127) // 128) * 128

    def pick(cap):
        t = (min(cap, S_pad) // 128) * 128
        while t >= 128:
            if S_pad % t == 0:
                return t
            t -= 128
        return 128

    return pick(cap_a), pick(cap_q), pick(cap_kv), S_pad


# ---------------------------------------------------------------------------
# One-time, isolated probe for single-buffered (Buffered(1)) weight blocks.
# ---------------------------------------------------------------------------
_BUFFERED_OK = None


def _probe_kernel(w_ref, o_ref):
    o_ref[...] = w_ref[...] + 1.0


def _buffered_weights_supported() -> bool:
    global _BUFFERED_OK
    if _BUFFERED_OK is None:
        try:
            f = pl.pallas_call(
                _probe_kernel,
                out_shape=jax.ShapeDtypeStruct((16, 128), jnp.float32),
                grid_spec=pltpu.PrefetchScalarGridSpec(
                    num_scalar_prefetch=0,
                    grid=(2,),
                    in_specs=[pl.BlockSpec((8, 128), lambda i: (0, 0),
                                           pipeline_mode=pl.Buffered(1))],
                    out_specs=pl.BlockSpec((8, 128), lambda i: (i, 0)),
                ),
            )
            jax.block_until_ready(f(jnp.zeros((8, 128), jnp.float32)))
            _BUFFERED_OK = True
        except Exception:
            _BUFFERED_OK = False
    return _BUFFERED_OK


def _weight_spec(block_shape, index_map, single_buffer: bool):
    """Constant-index weight spec; single-buffered when supported."""
    if single_buffer:
        return pl.BlockSpec(block_shape, index_map,
                            pipeline_mode=pl.Buffered(1))
    return pl.BlockSpec(block_shape, index_map)


# ---------------------------------------------------------------------------
# Kernel A: fused QKV projection + head split.
#   q, v -> bf16 (B, H, S, dh);  k -> bf16 (B, H, dh, S)  (seq on lanes).
# ---------------------------------------------------------------------------
def _qkv_proj_kernel(x_ref, w_in_t_ref, b_in_ref, q_ref, k_ref, v_ref,
                     *, n_heads: int, dim_head: int):
    E = n_heads * dim_head
    x = x_ref[0].astype(jnp.bfloat16)                        # (tq_a, E)
    qkv = jnp.dot(x, w_in_t_ref[...],
                  preferred_element_type=jnp.float32)        # (tq_a, 3E) f32
    qkv = qkv + b_in_ref[0]
    tq = qkv.shape[0]

    def split(lo):
        # Cast to bf16 BEFORE the relayout (halves relayout bytes).
        h = qkv[:, lo:lo + E].astype(jnp.bfloat16)           # (tq_a, E)
        h = h.reshape(tq, n_heads, dim_head)                 # (tq_a, H, dh)
        return jnp.transpose(h, (1, 0, 2))                   # (H, tq_a, dh)

    # 1/sqrt(dh) is already folded into W_in/b_in wrapper-side.
    q_ref[0] = split(0)
    v_ref[0] = split(2 * E)
    k_ref[0] = jnp.swapaxes(split(E), 1, 2)                  # (H, dh, tq_a)


# ---------------------------------------------------------------------------
# Kernel B: flash attention (online softmax over kv tiles) + fused out_proj.
# ---------------------------------------------------------------------------
def _flash_attn_outproj_kernel(q_ref, k_ref, v_ref, w_out3_ref, b_out_ref,
                               o_ref, m_sc, l_sc, acc_sc,
                               *, s_valid: int, kv_tile: int,
                               use_bf16_exp: bool, mask_kv: bool):
    ki = pl.program_id(2)

    @pl.when(ki == 0)
    def _():
        m_sc[...] = jnp.full_like(m_sc, -jnp.inf)
        l_sc[...] = jnp.zeros_like(l_sc)
        acc_sc[...] = jnp.zeros_like(acc_sc)

    q = q_ref[0]                                             # (H, tq, dh) bf16
    k = k_ref[0]                                             # (H, dh, tk) bf16
    v = v_ref[0]                                             # (H, tk, dh) bf16

    # Scores: natural NN batched contraction, lane-dense K block.
    s = jnp.einsum("hqd,hdk->hqk", q, k,
                   preferred_element_type=jnp.float32)       # (H, tq, tk) f32

    if mask_kv:  # padded sequence tail: mask padded KV columns
        col = jax.lax.broadcasted_iota(jnp.int32, (1, kv_tile), 1) + ki * kv_tile
        s = jnp.where(col < s_valid, s, jnp.float32(-1e30))

    m_prev = m_sc[...]
    m_new = jnp.maximum(m_prev, jnp.max(s, axis=-1, keepdims=True))
    alpha = jnp.exp(m_prev - m_new)
    s_shift = s - m_new
    if use_bf16_exp:
        # bf16 EUP (v6e/v7x): ~2x exp throughput, bf16 P feeds the PV matmul.
        p_mm = jnp.exp(s_shift.astype(jnp.bfloat16))
        p_sum = jnp.sum(p_mm.astype(jnp.float32), axis=-1, keepdims=True)
    else:
        p32 = jnp.exp(s_shift)
        p_mm = p32.astype(v.dtype)
        p_sum = jnp.sum(p32, axis=-1, keepdims=True)

    l_sc[...] = alpha * l_sc[...] + p_sum
    acc_sc[...] = alpha * acc_sc[...] + jnp.einsum(
        "hqk,hkd->hqd", p_mm, v,
        preferred_element_type=jnp.float32)                  # (H, tq, dh) f32
    m_sc[...] = m_new

    @pl.when(ki == pl.num_programs(2) - 1)
    def _():
        inv_l = pl.reciprocal(l_sc[...], approx=True)
        # Cast before any further data movement; no (H,tq,dh)->(tq,E) transpose:
        # out_proj is a statically-unrolled per-head matmul accumulation.
        attn = (acc_sc[...] * inv_l).astype(jnp.bfloat16)    # (H, tq, dh)
        H, tq, _ = attn.shape
        Eo = w_out3_ref.shape[-1]
        y = jnp.broadcast_to(b_out_ref[0], (tq, Eo)).astype(jnp.float32)
        for h in range(H):
            y = y + jnp.dot(attn[h], w_out3_ref[h],
                            preferred_element_type=jnp.float32)
        o_ref[0] = y.astype(o_ref.dtype)


# ---------------------------------------------------------------------------
# Forward driver.
# ---------------------------------------------------------------------------
def _forward(x, w_in_t, b_in_2d, w_out3, b_out_2d, *, n_heads, dim_head,
             s_valid, tq_a, tq, tk, cfg):
    B, S_pad, E = x.shape
    H, dh = n_heads, dim_head
    n_q, n_kv = S_pad // tq, S_pad // tk
    mask_kv = (S_pad != s_valid)
    single_buf = _buffered_weights_supported()
    vmem_limit = cfg["vmem_limit"]

    # ---- Kernel A: QKV projection ----
    qkv_cost = pl.CostEstimate(
        flops=2 * B * S_pad * E * 3 * E,
        transcendentals=0,
        bytes_accessed=(4 * B * S_pad * E + 2 * E * 3 * E
                        + 3 * 2 * B * S_pad * E))

    q, k, v = pl.pallas_call(
        functools.partial(_qkv_proj_kernel, n_heads=H, dim_head=dh),
        out_shape=(jax.ShapeDtypeStruct((B, H, S_pad, dh), jnp.bfloat16),
                   jax.ShapeDtypeStruct((B, H, dh, S_pad), jnp.bfloat16),
                   jax.ShapeDtypeStruct((B, H, S_pad, dh), jnp.bfloat16)),
        grid_spec=pltpu.PrefetchScalarGridSpec(
            num_scalar_prefetch=0,
            grid=(B, S_pad // tq_a),
            in_specs=[
                pl.BlockSpec((1, tq_a, E), lambda b, i: (b, i, 0)),
                _weight_spec((E, 3 * E), lambda b, i: (0, 0), single_buf),
                _weight_spec((1, 3 * E), lambda b, i: (0, 0), single_buf),
            ],
            out_specs=[
                pl.BlockSpec((1, H, tq_a, dh), lambda b, i: (b, 0, i, 0)),
                pl.BlockSpec((1, H, dh, tq_a), lambda b, i: (b, 0, 0, i)),
                pl.BlockSpec((1, H, tq_a, dh), lambda b, i: (b, 0, i, 0)),
            ],
        ),
        compiler_params=pltpu.CompilerParams(
            dimension_semantics=("parallel", "parallel"),
            vmem_limit_bytes=vmem_limit),
        cost_estimate=qkv_cost,
    )(x, w_in_t, b_in_2d)

    # ---- Kernel B: flash attention + fused out_proj ----
    attn_cost = pl.CostEstimate(
        flops=4 * B * S_pad * S_pad * E + 2 * B * S_pad * E * E,
        transcendentals=B * H * S_pad * S_pad,
        bytes_accessed=(2 * B * S_pad * E                    # q (bf16)
                        + 2 * 2 * B * n_q * S_pad * E        # k, v re-reads
                        + 2 * E * E + 4 * B * S_pad * E),    # W_out + output
    )

    out = pl.pallas_call(
        functools.partial(_flash_attn_outproj_kernel,
                          s_valid=s_valid, kv_tile=tk,
                          use_bf16_exp=cfg["bf16_exp"], mask_kv=mask_kv),
        out_shape=jax.ShapeDtypeStruct((B, S_pad, E), x.dtype),
        grid_spec=pltpu.PrefetchScalarGridSpec(
            num_scalar_prefetch=0,
            grid=(B, n_q, n_kv),
            in_specs=[
                pl.BlockSpec((1, H, tq, dh), lambda b, i, j: (b, 0, i, 0)),
                pl.BlockSpec((1, H, dh, tk), lambda b, i, j: (b, 0, 0, j)),
                pl.BlockSpec((1, H, tk, dh), lambda b, i, j: (b, 0, j, 0)),
                _weight_spec((H, dh, E), lambda b, i, j: (0, 0, 0), single_buf),
                _weight_spec((1, E), lambda b, i, j: (0, 0), single_buf),
            ],
            out_specs=pl.BlockSpec((1, tq, E), lambda b, i, j: (b, i, 0)),
            scratch_shapes=[
                pltpu.VMEM((H, tq, 1), jnp.float32),     # running max
                pltpu.VMEM((H, tq, 1), jnp.float32),     # running denom
                pltpu.VMEM((H, tq, dh), jnp.float32),    # running accumulator
            ],
        ),
        compiler_params=pltpu.CompilerParams(
            dimension_semantics=("parallel", "parallel", "arbitrary"),
            vmem_limit_bytes=vmem_limit),
        cost_estimate=attn_cost,
    )(q, k, v, w_out3, b_out_2d)

    return out


def self_attention_pallas(x, w_in, b_in, w_out, b_out, n_heads: int):
    """x: (B, S, E); w_in: (3E, E); b_in: (3E,); w_out: (E, E); b_out: (E,)."""
    B, S, E = x.shape
    H = n_heads
    dh = E // H
    scale = 1.0 / math.sqrt(dh)

    cfg = _chip_config()
    tq_a, tq, tk, S_pad = _plan_tiles(S, cfg)

    # Wrapper-side glue: transpose so kernels do x @ W on the MXU, fold the
    # 1/sqrt(dim_head) scale into the q part of the in-projection, pre-cast
    # weights to bf16, and reshape W_out to per-head (H, dh, E) slabs.
    w_in_t = jnp.transpose(w_in)                             # (E, 3E)
    w_in_t = w_in_t.at[:, :E].multiply(scale)
    b_in_s = b_in.at[:E].multiply(scale)
    w_in_t = w_in_t.astype(jnp.bfloat16)
    b_in_2d = b_in_s.reshape(1, 3 * E).astype(jnp.float32)
    w_out3 = jnp.transpose(w_out).reshape(H, dh, E).astype(jnp.bfloat16)
    b_out_2d = b_out.reshape(1, E).astype(jnp.float32)

    x_in = x
    if S_pad != S:
        x_in = jnp.pad(x, ((0, 0), (0, S_pad - S), (0, 0)))

    out = _forward(x_in, w_in_t, b_in_2d, w_out3, b_out_2d,
                   n_heads=H, dim_head=dh, s_valid=S,
                   tq_a=tq_a, tq=tq, tk=tk, cfg=cfg)
    if S_pad != S:
        out = out[:, :S, :]
    return out


def self_attention_ref(x, w_in, b_in, w_out, b_out, n_heads: int):
    """Pure-JAX reference mirroring the PyTorch forward (casual_mask=False)."""
    B, S, E = x.shape
    dh = E // n_heads
    qkv = jnp.einsum("bse,fe->bsf", x, w_in) + b_in          # (B, S, 3E)
    q, k, v = jnp.split(qkv, 3, axis=-1)

    def heads(t):  # (B, S, E) -> (B, H, S, dh)
        return t.reshape(B, S, n_heads, dh).transpose(0, 2, 1, 3)

    q, k, v = heads(q), heads(k), heads(v)
    w = jnp.einsum("bhqd,bhkd->bhqk", q, k) / math.sqrt(dh)
    w = jax.nn.softmax(w, axis=-1)
    out = jnp.einsum("bhqk,bhkd->bhqd", w, v)
    out = out.transpose(0, 2, 1, 3).reshape(B, S, E)
    return jnp.einsum("bse,fe->bsf", out, w_out) + b_out


if __name__ == "__main__":
    # Small shapes consistent with the module: batch=2, seq=8, embed=32, heads=4.
    B, S, E, H = 2, 8, 32, 4

    key = jax.random.PRNGKey(0)
    k_x, k_wi, k_bi, k_wo, k_bo = jax.random.split(key, 5)

    x = jax.random.normal(k_x, (B, S, E), dtype=jnp.float32)
    w_in = jax.random.normal(k_wi, (3 * E, E), dtype=jnp.float32) * 0.05
    b_in = jax.random.normal(k_bi, (3 * E,), dtype=jnp.float32) * 0.05
    w_out = jax.random.normal(k_wo, (E, E), dtype=jnp.float32) * 0.05
    b_out = jax.random.normal(k_bo, (E,), dtype=jnp.float32) * 0.05

    out = self_attention_pallas(x, w_in, b_in, w_out, b_out, n_heads=H)
    out = jax.block_until_ready(out)

    ref = self_attention_ref(x, w_in, b_in, w_out, b_out, n_heads=H)
    assert out.shape == (B, S, E)
    # bf16 MXU inputs + (chip-dependent) bf16 exp + approx reciprocal.
    assert jnp.allclose(out, ref, atol=2e-2, rtol=2e-2), "mismatch vs JAX reference"

    print("KERNEL_OK")
</pallas_src>

<mosaic_0001>
module attributes {stable_mosaic.version = 11 : i64} {
  func.func @_probe_kernel(%arg0: i32, %arg1: memref<8x128xf32, #tpu.memory_space<vmem>>, %arg2: memref<8x128xf32, #tpu.memory_space<vmem>>) attributes {dimension_semantics = [#tpu.dimension_semantics<arbitrary>], iteration_bounds = array<i64: 2>, scalar_prefetch = 0 : i64, scratch_operands = 0 : i64, tpu.core_type = #tpu.core_type<tc>, window_params = [{pipeline_mode = #tpu.pipeline_mode<synchronous>, transform_indices = @transform_0, window_bounds = array<i64: 8, 128>}, {transform_indices = @transform_1, window_bounds = array<i64: 8, 128>}]} {
    %c0 = arith.constant 0 : index
    %c0_0 = arith.constant 0 : index
    %0 = vector.load %arg1[%c0, %c0_0] : memref<8x128xf32, #tpu.memory_space<vmem>>, vector<8x128xf32>
    %cst = arith.constant 1.000000e+00 : f32
    %1 = vector.broadcast %cst : f32 to vector<8x128xf32>
    %2 = arith.addf %0, %1 : vector<8x128xf32>
    %c0_1 = arith.constant 0 : index
    %c0_2 = arith.constant 0 : index
    %3 = vector.load %arg2[%c0_1, %c0_2] : memref<8x128xf32, #tpu.memory_space<vmem>>, vector<8x128xf32>
    tpu.vector_store %arg2[%c0_1, %c0_2], %2 {strides = array<i32>} : memref<8x128xf32, #tpu.memory_space<vmem>>, vector<8x128xf32>,
    return
  }
  func.func @transform_0(%arg0: i32) -> (i32, i32) {
    %c0_i32 = arith.constant 0 : i32
    %c0_i32_0 = arith.constant 0 : i32
    %c0_i32_1 = arith.constant 0 : i32
    return %c0_i32, %c0_i32_0 : i32, i32
  }
  func.func @transform_1(%arg0: i32) -> (i32, i32) {
    %c0_i32 = arith.constant 0 : i32
    %c0_i32_0 = arith.constant 0 : i32
    return %arg0, %c0_i32 : i32, i32
  }
}

module attributes {stable_mosaic.version = 11 : i64} {
  func.func @_qkv_proj_kernel(%arg0: i32, %arg1: i32, %arg2: memref<1x8x32xf32, #tpu.memory_space<vmem>>, %arg3: memref<32x96xbf16, #tpu.memory_space<vmem>>, %arg4: memref<1x96xf32, #tpu.memory_space<vmem>>, %arg5: memref<1x4x8x8xbf16, #tpu.memory_space<vmem>>, %arg6: memref<1x4x8x8xbf16, #tpu.memory_space<vmem>>, %arg7: memref<1x4x8x8xbf16, #tpu.memory_space<vmem>>) attributes {dimension_semantics = [#tpu.dimension_semantics<parallel>, #tpu.dimension_semantics<parallel>], iteration_bounds = array<i64: 2, 1>, scalar_prefetch = 0 : i64, scratch_operands = 0 : i64, tpu.core_type = #tpu.core_type<tc>, window_params = [{transform_indices = @transform_0, window_bounds = array<i64: 1, 8, 32>}, {pipeline_mode = #tpu.pipeline_mode<synchronous>, transform_indices = @transform_1, window_bounds = array<i64: 32, 96>}, {pipeline_mode = #tpu.pipeline_mode<synchronous>, transform_indices = @transform_2, window_bounds = array<i64: 1, 96>}, {transform_indices = @transform_3, window_bounds = array<i64: 1, 4, 8, 8>}, {transform_indices = @transform_4, window_bounds = array<i64: 1, 4, 8, 8>}, {transform_indices = @transform_5, window_bounds = array<i64: 1, 4, 8, 8>}]} {
    %c0 = arith.constant 0 : index
    %c0_0 = arith.constant 0 : index
    %c0_1 = arith.constant 0 : index
    %0 = vector.load %arg2[%c0, %c0_0, %c0_1] : memref<1x8x32xf32, #tpu.memory_space<vmem>>, vector<1x8x32xf32>
    %1 = vector.shape_cast %0 : vector<1x8x32xf32> to vector<8x32xf32>
    %2 = arith.truncf %1 : vector<8x32xf32> to vector<8x32xbf16>
    %c0_2 = arith.constant 0 : index
    %c0_3 = arith.constant 0 : index
    %3 = vector.load %arg3[%c0_2, %c0_3] : memref<32x96xbf16, #tpu.memory_space<vmem>>, vector<32x96xbf16>
    %cst = arith.constant dense<0.000000e+00> : vector<8x96xf32>
    %4 = tpu.matmul %2, %3, %cst {dimension_numbers = #tpu.dot_dimension_numbers<[1], [0], [0], [1], [0, 0, 1, 1], [], []>} : vector<8x32xbf16>, vector<32x96xbf16>, vector<8x96xf32> -> vector<8x96xf32>
    %c0_4 = arith.constant 0 : index
    %c0_5 = arith.constant 0 : index
    %5 = vector.load %arg4[%c0_4, %c0_5] : memref<1x96xf32, #tpu.memory_space<vmem>>, vector<1x96xf32>
    %6 = vector.shape_cast %5 : vector<1x96xf32> to vector<96xf32>
    %7 = vector.shape_cast %6 : vector<96xf32> to vector<1x96xf32>
    %8 = vector.broadcast %7 : vector<1x96xf32> to vector<8x96xf32>
    %9 = arith.addf %4, %8 : vector<8x96xf32>
    %10 = vector.extract_strided_slice %9 {offsets = [0, 0], sizes = [8, 32], strides = [1, 1]} : vector<8x96xf32> to vector<8x32xf32>
    %11 = arith.truncf %10 : vector<8x32xf32> to vector<8x32xbf16>
    %12 = vector.shape_cast %11 : vector<8x32xbf16> to vector<8x4x8xbf16>
    %13 = tpu.transpose %12, [1, 0, 2] : vector<8x4x8xbf16> -> vector<4x8x8xbf16>
    %c0_6 = arith.constant 0 : index
    %c0_7 = arith.constant 0 : index
    %c0_8 = arith.constant 0 : index
    %c0_9 = arith.constant 0 : index
    %14 = vector.load %arg5[%c0_6, %c0_7, %c0_8, %c0_9] : memref<1x4x8x8xbf16, #tpu.memory_space<vmem>>, vector<1x4x8x8xbf16>
    %15 = vector.shape_cast %14 : vector<1x4x8x8xbf16> to vector<4x8x8xbf16>
    %16 = vector.shape_cast %13 : vector<4x8x8xbf16> to vector<1x4x8x8xbf16>
    tpu.vector_store %arg5[%c0_6, %c0_7, %c0_8, %c0_9], %16 {strides = array<i32>} : memref<1x4x8x8xbf16, #tpu.memory_space<vmem>>, vector<1x4x8x8xbf16>,
    %17 = vector.extract_strided_slice %9 {offsets = [0, 64], sizes = [8, 32], strides = [1, 1]} : vector<8x96xf32> to vector<8x32xf32>
    %18 = arith.truncf %17 : vector<8x32xf32> to vector<8x32xbf16>
    %19 = vector.shape_cast %18 : vector<8x32xbf16> to vector<8x4x8xbf16>
    %20 = tpu.transpose %19, [1, 0, 2] : vector<8x4x8xbf16> -> vector<4x8x8xbf16>
    %c0_10 = arith.constant 0 : index
    %c0_11 = arith.constant 0 : index
    %c0_12 = arith.constant 0 : index
    %c0_13 = arith.constant 0 : index
    %21 = vector.load %arg7[%c0_10, %c0_11, %c0_12, %c0_13] : memref<1x4x8x8xbf16, #tpu.memory_space<vmem>>, vector<1x4x8x8xbf16>
    %22 = vector.shape_cast %21 : vector<1x4x8x8xbf16> to vector<4x8x8xbf16>
    %23 = vector.shape_cast %20 : vector<4x8x8xbf16> to vector<1x4x8x8xbf16>
    tpu.vector_store %arg7[%c0_10, %c0_11, %c0_12, %c0_13], %23 {strides = array<i32>} : memref<1x4x8x8xbf16, #tpu.memory_space<vmem>>, vector<1x4x8x8xbf16>,
    %24 = vector.extract_strided_slice %9 {offsets = [0, 32], sizes = [8, 32], strides = [1, 1]} : vector<8x96xf32> to vector<8x32xf32>
    %25 = arith.truncf %24 : vector<8x32xf32> to vector<8x32xbf16>
    %26 = vector.shape_cast %25 : vector<8x32xbf16> to vector<8x4x8xbf16>
    %27 = tpu.transpose %26, [1, 0, 2] : vector<8x4x8xbf16> -> vector<4x8x8xbf16>
    %28 = tpu.transpose %27, [0, 2, 1] : vector<4x8x8xbf16> -> vector<4x8x8xbf16>
    %c0_14 = arith.constant 0 : index
    %c0_15 = arith.constant 0 : index
    %c0_16 = arith.constant 0 : index
    %c0_17 = arith.constant 0 : index
    %29 = vector.load %arg6[%c0_14, %c0_15, %c0_16, %c0_17] : memref<1x4x8x8xbf16, #tpu.memory_space<vmem>>, vector<1x4x8x8xbf16>
    %30 = vector.shape_cast %29 : vector<1x4x8x8xbf16> to vector<4x8x8xbf16>
    %31 = vector.shape_cast %28 : vector<4x8x8xbf16> to vector<1x4x8x8xbf16>
    tpu.vector_store %arg6[%c0_14, %c0_15, %c0_16, %c0_17], %31 {strides = array<i32>} : memref<1x4x8x8xbf16, #tpu.memory_space<vmem>>, vector<1x4x8x8xbf16>,
    return
  }
  func.func @transform_0(%arg0: i32, %arg1: i32) -> (i32, i32, i32) {
    %c0_i32 = arith.constant 0 : i32
    %c0_i32_0 = arith.constant 0 : i32
    return %arg0, %arg1, %c0_i32 : i32, i32, i32
  }
  func.func @transform_1(%arg0: i32, %arg1: i32) -> (i32, i32) {
    %c0_i32 = arith.constant 0 : i32
    %c0_i32_0 = arith.constant 0 : i32
    %c0_i32_1 = arith.constant 0 : i32
    return %c0_i32, %c0_i32_0 : i32, i32
  }
  func.func @transform_2(%arg0: i32, %arg1: i32) -> (i32, i32) {
    %c0_i32 = arith.constant 0 : i32
    %c0_i32_0 = arith.constant 0 : i32
    %c0_i32_1 = arith.constant 0 : i32
    return %c0_i32, %c0_i32_0 : i32, i32
  }
  func.func @transform_3(%arg0: i32, %arg1: i32) -> (i32, i32, i32, i32) {
    %c0_i32 = arith.constant 0 : i32
    %c0_i32_0 = arith.constant 0 : i32
    %c0_i32_1 = arith.constant 0 : i32
    return %arg0, %c0_i32, %arg1, %c0_i32_0 : i32, i32, i32, i32
  }
  func.func @transform_4(%arg0: i32, %arg1: i32) -> (i32, i32, i32, i32) {
    %c0_i32 = arith.constant 0 : i32
    %c0_i32_0 = arith.constant 0 : i32
    %c0_i32_1 = arith.constant 0 : i32
    return %arg0, %c0_i32, %c0_i32_0, %arg1 : i32, i32, i32, i32
  }
  func.func @transform_5(%arg0: i32, %arg1: i32) -> (i32, i32, i32, i32) {
    %c0_i32 = arith.constant 0 : i32
    %c0_i32_0 = arith.constant 0 : i32
    %c0_i32_1 = arith.constant 0 : i32
    return %arg0, %c0_i32, %arg1, %c0_i32_0 : i32, i32, i32, i32
  }
}

</mosaic_0001>

<llo_original>
// kernel: tpu_custom_call.1
$region0: #{tpu_custom_call.1}
  #allocation0 [shape = 'u32[]', space=smem, size = 0x4, offset = 0x4, fixed_abs, tag = 'smem constant byte address 0x4 - core index']
  #allocation1 [shape = 'u32[144,128]{1,0:T(1,128)}', space=vmem, size = 0x12000, scoped, tag = 'internal scratch']
  %s0 = inlined_call_operand.hbm [shape: f32[8,128], index: 0, kind: input, shape index: {}]
  %s1 = inlined_call_operand.hbm [shape: f32[16,128], index: 1, kind: output, shape index: {}]
  %s2 = sld [smem:[#allocation0]]
  $region41: #{tpu_custom_call.1} parent=0
    _
  %s4 = ssub.s32 1, %s2
  %s5 = scalar_select 0, %s4, %s2
  $region1: #{tpu_custom_call.1} parent=0
    #allocation2 [shape = 'u8[4096]{0}', space=vmem, size = 0x1000, scoped, tag = 'input window, operand 0, single buffered']
    #allocation3 [shape = 's32[2]{0}', space=sflag, size = 0x8, scoped, tag = 'scoped memory for tpu_custom_call.1']
    #allocation4 [shape = 's32[2]{0}', space=sflag, size = 0x8, scoped, tag = 'scoped memory for tpu_custom_call.1']
    #allocation5 [shape = 'u8[8192]{0}', space=vmem, size = 0x2000, scoped, tag = 'output window, operand 0']
    %6 = vsyncpa [#allocation3], 0
    %7 = vsyncpa [#allocation4], 0
    %s8 = scalar_lea.sflag [#allocation4], 1
    %9 = vsyncpa %s8, 0
    loop: start=0, step=1, limit=4
    $region2: #{tpu_custom_call.1} parent=1 // loop_pre_header
      _
    $region3: #{tpu_custom_call.1} parent=1 // loop_header
      %s11 = sphi 0, %s15
      %p12 = scmp.ge.s32.totalorder %s11, 4
      %s19 = sphi 0, %s19
      %s21 = sphi 0, %s19
      %s22 = sphi 0, %s21
      %s36 = sphi 0, %s22
      %s42 = sphi 0, %s44
      %s45 = sphi 0, %s42
      %s46 = sphi 0, %s45
      %s62 = sphi 0, %s46
    $region4: #{tpu_custom_call.1} parent=1 // loop_header_branch
      %14 = sbr.rel (%p12) target = $region8
    $region5: #{tpu_custom_call.1} parent=1 // loop_body
      %s16 = ssub.s32 %s11, 1
      %s17 = ssub.s32 %s11, 2
      %s18 = sadd.s32 %s11, 1
      %s20 = sadd.s32 %s19, 1
      %p23 = scmp.eq.s32.totalorder %s11, 1
      %p24 = scmp.ne.s32.totalorder %s19, %s21
      %p25 = scmp.eq.s32.totalorder %s11, 0
      %p26 = por %p24, %p25
      %p27 = scmp.ne.s32.totalorder %s19, %s21
      %p28 = scmp.eq.s32.totalorder %s16, 1
      %p29 = por %p27, %p28
      %p30 = scmp.ne.s32.totalorder %s21, %s22
      %p31 = scmp.eq.s32.totalorder %s16, 0
      %p32 = por %p30, %p31
      %p33 = scmp.ne.s32.totalorder %s21, %s22
      %p34 = scmp.eq.s32.totalorder %s17, 1
      %p35 = por %p33, %p34
      %p37 = scmp.ne.s32.totalorder %s22, %s36
      %p38 = scmp.eq.s32.totalorder %s17, 0
      %p39 = por %p37, %p38
      %s40 = ssub.s32 %s11, %s18
      %p41 = scmp.eq.s32.totalorder %s40, 0
      %s43 = sadd.s32 %s42, 1
      %s44 = scalar_select %p41, %s42, %s43
      %p47 = pneg %p41
      %p48 = scmp.eq.s32.totalorder %s11, 1
      %p49 = por %p47, %p48
      %p50 = scmp.ne.s32.totalorder %s42, %s45
      %p51 = scmp.eq.s32.totalorder %s11, 0
      %p52 = por %p50, %p51
      %p53 = scmp.ne.s32.totalorder %s42, %s45
      %p54 = scmp.eq.s32.totalorder %s16, 1
      %p55 = por %p53, %p54
      %p56 = scmp.ne.s32.totalorder %s45, %s46
      %p57 = scmp.eq.s32.totalorder %s16, 0
      %p58 = por %p56, %p57
      %p59 = scmp.ne.s32.totalorder %s45, %s46
      %p60 = scmp.eq.s32.totalorder %s17, 1
      %p61 = por %p59, %p60
      %p63 = scmp.ne.s32.totalorder %s46, %s62
      %p64 = scmp.eq.s32.totalorder %s17, 0
      %p65 = por %p63, %p64
      %p66 = scmp.le.s32.totalorder 1, %s11
      %p67 = scmp.lt.s32.totalorder %s11, 3
      %p68 = pnand %p66, %p67
      %p69 = pneg %p68
      // Predicated region
      $region9: #{tpu_custom_call.1} parent=5 // pred_check
        _
      $region10: #{tpu_custom_call.1} parent=5 // pred_check_branch
        %71 = sbr.rel (%p68) target = $region12
      $region11: #{tpu_custom_call.1} parent=5 // pred_region
        %s72 = ssub.s32 %s11, 1
        // Predicated region
        $region13: #{tpu_custom_call.1} parent=11 // pred_check
          %p73 = pneg %p32
        $region14: #{tpu_custom_call.1} parent=11 // pred_check_branch
          %75 = sbr.rel (%p73) target = $region16
        $region15: #{tpu_custom_call.1} parent=11 // pred_region
          %s77 = ssub.s32 128, 128
          %78 = vsyncadd [#allocation3], %s77
          %s80 = sshll.u32 [#allocation2], 4
          %s81 = int_to_ptr.vmem [resolvable:$true] %s80
          %83 = dma.hbm_to_vmem [thread:$0]  %s0, 128, %s81, [#allocation3]
        $region16: #{tpu_custom_call.1} parent=11 // pred_fallthru
          _
      $region12: #{tpu_custom_call.1} parent=5 // pred_fallthru
        _
      %p84 = scmp.lt.s32.totalorder %s11, 2
      // Predicated region
      $region17: #{tpu_custom_call.1} parent=5 // pred_check
        %p85 = pneg %p84
      $region18: #{tpu_custom_call.1} parent=5 // pred_check_branch
        %87 = sbr.rel (%p85) target = $region20
      $region19: #{tpu_custom_call.1} parent=5 // pred_region
        _
      $region20: #{tpu_custom_call.1} parent=5 // pred_fallthru
        _
      %p88 = scmp.le.s32.totalorder 1, %s11
      %p89 = scmp.lt.s32.totalorder %s11, 3
      %p90 = pnand %p88, %p89
      %p91 = pneg %p90
      // Predicated region
      $region21: #{tpu_custom_call.1} parent=5 // pred_check
        _
      $region22: #{tpu_custom_call.1} parent=5 // pred_check_branch
        %93 = sbr.rel (%p90) target = $region24
      $region23: #{tpu_custom_call.1} parent=5 // pred_region
        %s94 = ssub.s32 %s11, 1
        // Predicated region
        $region25: #{tpu_custom_call.1} parent=23 // pred_check
          %p95 = pneg %p32
        $region26: #{tpu_custom_call.1} parent=23 // pred_check_branch
          %97 = sbr.rel (%p95) target = $region28
        $region27: #{tpu_custom_call.1} parent=23 // pred_region
          %98 = dma.done [#allocation3], 128
        $region28: #{tpu_custom_call.1} parent=23 // pred_fallthru
          _
        %p99 = pneg %p32
        %p100 = pneg %p29
        %p101 = pneg %p58
        %p102 = pneg %p55
        %s103 = sand.u32 %s45, 1
        %s104 = scalar_lea.sflag [#allocation4], %s103
        %s105 = sand.u32 %s45, 1
        %s106 = smul.addr %s105, 8
        %s107 = scalar_lea.vmem [#allocation5], %s106
        %v108 = vld [vmem:[#allocation2] sm:$0xff]
        %v109 = vadd.f32 %v108, 1.0
        %110 = vst [vmem:[%s107] sm:$0xff] %v109
        %s111 = sand.u32 %s45, 1
        %s112 = scalar_lea.sflag [#allocation4], %s111
        %s113 = sand.u32 %s45, 1
        %s114 = smul.addr %s113, 8
        %s115 = scalar_lea.vmem [#allocation5], %s114
        // Predicated region
        $region29: #{tpu_custom_call.1} parent=23 // pred_check
          %p116 = pneg %p55
        $region30: #{tpu_custom_call.1} parent=23 // pred_check_branch
          %118 = sbr.rel (%p116) target = $region32
        $region31: #{tpu_custom_call.1} parent=23 // pred_region
          %s120 = ssub.s32 128, 128
          %121 = vsyncadd %s112, %s120
          %s122 = smul.addr %s16, 128
          %s123 = scalar_lea.hbm %s1, %s122
          %s125 = sshll.u32 %s115, 4
          %s126 = int_to_ptr.vmem [resolvable:$true] %s125
          %128 = dma.vmem_to_hbm [thread:$0]  %s126, 128, %s123, %s112
        $region32: #{tpu_custom_call.1} parent=23 // pred_fallthru
          _
      $region24: #{tpu_custom_call.1} parent=5 // pred_fallthru
        _
      %p129 = scmp.le.s32.totalorder 2, %s11
      // Predicated region
      $region33: #{tpu_custom_call.1} parent=5 // pred_check
        %p130 = pneg %p129
      $region34: #{tpu_custom_call.1} parent=5 // pred_check_branch
        %132 = sbr.rel (%p130) target = $region36
      $region35: #{tpu_custom_call.1} parent=5 // pred_region
        %s133 = ssub.s32 %s11, 2
        // Predicated region
        $region37: #{tpu_custom_call.1} parent=35 // pred_check
          %p134 = pneg %p61
        $region38: #{tpu_custom_call.1} parent=35 // pred_check_branch
          %136 = sbr.rel (%p134) target = $region40
        $region39: #{tpu_custom_call.1} parent=35 // pred_region
          %s137 = sand.u32 %s46, 1
          %s138 = scalar_lea.sflag [#allocation4], %s137
          %s139 = sand.u32 %s46, 1
          %s140 = smul.addr %s139, 8
          %s141 = scalar_lea.vmem [#allocation5], %s140
          %142 = dma.done %s138, 128
        $region40: #{tpu_custom_call.1} parent=35 // pred_fallthru
          _
      $region36: #{tpu_custom_call.1} parent=5 // pred_fallthru
        _
    $region6: #{tpu_custom_call.1} parent=1 // loop_footer
      %s15 = sadd.s32 1, %s11
    $region7: #{tpu_custom_call.1} parent=1 // loop_footer_branch
      %10 = sbr.rel target = $region3
    $region8: #{tpu_custom_call.1} parent=1 // loop_exit
      _
    %143 = vsyncpa [#allocation3], 1
    %s144 = scalar_lea.sflag [#allocation3], 1
    %145 = vsyncpa %s144, 1
    %146 = vsyncpa [#allocation4], 1
    %s147 = scalar_lea.sflag [#allocation4], 1
    %148 = vsyncpa %s147, 1

// kernel: tpu_custom_call.1
$region0: #{tpu_custom_call.1}
  #allocation0 [shape = 'u32[]', space=smem, size = 0x4, offset = 0x4, fixed_abs, tag = 'smem constant byte address 0x4 - core index']
  #allocation1 [shape = 'u32[144,128]{1,0:T(1,128)}', space=vmem, size = 0x12000, scoped, tag = 'internal scratch']
  %s0 = inlined_call_operand.hbm [shape: f32[2,8,32], index: 0, kind: input, shape index: {}]
  %s1 = inlined_call_operand.hbm [shape: bf16[32,96], index: 1, kind: input, shape index: {}]
  %s2 = inlined_call_operand.vmem [shape: f32[1,96], index: 2, kind: input, shape index: {}]
  %s3 = inlined_call_operand.hbm [shape: bf16[2,4,8,8], index: 3, kind: output, shape index: {0}]
  %s4 = inlined_call_operand.hbm [shape: bf16[2,4,8,8], index: 4, kind: output, shape index: {1}]
  %s5 = inlined_call_operand.hbm [shape: bf16[2,4,8,8], index: 5, kind: output, shape index: {2}]
  %6 = xla_tuple %s3, %s4, %s5
  %s7 = sld [smem:[#allocation0]]
  $region69: #{tpu_custom_call.1} parent=0
    _
  %s9 = ssub.s32 1, %s7
  %s10 = scalar_select 0, %s9, %s7
  $region1: #{tpu_custom_call.1} parent=0
    #allocation2 [shape = 'u8[8192]{0}', space=vmem, size = 0x2000, scoped, tag = 'input window, operand 0']
    #allocation3 [shape = 's32[2]{0}', space=sflag, size = 0x8, scoped, tag = 'scoped memory for tpu_custom_call.1']
    #allocation4 [shape = 's32[2]{0}', space=sflag, size = 0x8, scoped, tag = 'scoped memory for tpu_custom_call.1']
    #allocation5 [shape = 'u8[8192]{0}', space=vmem, size = 0x2000, scoped, tag = 'input window, operand 1, single buffered']
    #allocation6 [shape = 's32[1]{0}', space=sflag, size = 0x4, scoped, tag = 'scoped memory for tpu_custom_call.1']
    #allocation7 [shape = 'u8[16384]{0}', space=vmem, size = 0x4000, scoped, tag = 'output window, operand 0']
    #allocation8 [shape = 'u8[16384]{0}', space=vmem, size = 0x4000, scoped, tag = 'output window, operand 1']
    #allocation9 [shape = 's32[2]{0}', space=sflag, size = 0x8, scoped, tag = 'scoped memory for tpu_custom_call.1']
    #allocation10 [shape = 'u8[16384]{0}', space=vmem, size = 0x4000, scoped, tag = 'output window, operand 2']
    %11 = vsyncpa [#allocation3], 0
    %s12 = scalar_lea.sflag [#allocation3], 1
    %13 = vsyncpa %s12, 0
    %14 = vsyncpa [#allocation6], 0
    %15 = vsyncpa [#allocation4], 0
    %s16 = scalar_lea.sflag [#allocation4], 1
    %17 = vsyncpa %s16, 0
    %18 = vsyncpa [#allocation9], 0
    %s19 = scalar_lea.sflag [#allocation9], 1
    %20 = vsyncpa %s19, 0
    loop: start=0, step=1, limit=4
    $region2: #{tpu_custom_call.1} parent=1 // loop_pre_header
      _
    $region3: #{tpu_custom_call.1} parent=1 // loop_header
      %s22 = sphi 0, %s26
      %p23 = scmp.ge.s32.totalorder %s22, 4
      %s29 = sphi 0, %s41
      %s30 = sphi 0, %s37
      %s31 = sphi 0, %s29
      %s32 = sphi 0, %s30
      %s33 = sphi 0, %s31
      %s34 = sphi 0, %s32
      %s46 = sphi 0, %s48
      %s49 = sphi 0, %s46
      %s50 = sphi 0, %s49
      %s66 = sphi 0, %s50
      %s70 = sphi 0, %s70
      %s72 = sphi 0, %s70
      %s73 = sphi 0, %s72
      %s87 = sphi 0, %s73
      %s91 = sphi 0, %s91
      %s93 = sphi 0, %s91
      %s94 = sphi 0, %s93
      %s108 = sphi 0, %s94
      %s116 = sphi 0, %s118
      %s119 = sphi 0, %s116
      %s120 = sphi 0, %s119
      %s136 = sphi 0, %s120
      %s144 = sphi 0, %s146
      %s147 = sphi 0, %s144
      %s148 = sphi 0, %s147
      %s164 = sphi 0, %s148
      %s172 = sphi 0, %s174
      %s175 = sphi 0, %s172
      %s176 = sphi 0, %s175
      %s192 = sphi 0, %s176
    $region4: #{tpu_custom_call.1} parent=1 // loop_header_branch
      %25 = sbr.rel (%p23) target = $region8
    $region5: #{tpu_custom_call.1} parent=1 // loop_body
      %s27 = ssub.s32 %s22, 1
      %s28 = ssub.s32 %s22, 2
      %s35 = sadd.s32 1, %s30
      %p36 = scmp.ge.s32.totalorder %s35, 1
      %s37 = scalar_select %p36, 0, %s35
      %s38 = sadd.s32 1, %s29
      %s39 = scalar_select %p36, %s38, %s29
      %p40 = scmp.ge.s32.totalorder %s39, 2
      %s41 = scalar_select %p40, 0, %s39
      %s42 = ssub.s32 %s29, %s41
      %s43 = ssub.s32 %s30, %s37
      %s44 = sor.u32 %s42, %s43
      %p45 = scmp.eq.s32.totalorder %s44, 0
      %s47 = sadd.s32 %s46, 1
      %s48 = scalar_select %p45, %s46, %s47
      %p51 = pneg %p45
      %p52 = scmp.eq.s32.totalorder %s22, 1
      %p53 = por %p51, %p52
      %p54 = scmp.ne.s32.totalorder %s46, %s49
      %p55 = scmp.eq.s32.totalorder %s22, 0
      %p56 = por %p54, %p55
      %p57 = scmp.ne.s32.totalorder %s46, %s49
      %p58 = scmp.eq.s32.totalorder %s27, 1
      %p59 = por %p57, %p58
      %p60 = scmp.ne.s32.totalorder %s49, %s50
      %p61 = scmp.eq.s32.totalorder %s27, 0
      %p62 = por %p60, %p61
      %p63 = scmp.ne.s32.totalorder %s49, %s50
      %p64 = scmp.eq.s32.totalorder %s28, 1
      %p65 = por %p63, %p64
      %p67 = scmp.ne.s32.totalorder %s50, %s66
      %p68 = scmp.eq.s32.totalorder %s28, 0
      %p69 = por %p67, %p68
      %s71 = sadd.s32 %s70, 1
      %p74 = scmp.eq.s32.totalorder %s22, 1
      %p75 = scmp.ne.s32.totalorder %s70, %s72
      %p76 = scmp.eq.s32.totalorder %s22, 0
      %p77 = por %p75, %p76
      %p78 = scmp.ne.s32.totalorder %s70, %s72
      %p79 = scmp.eq.s32.totalorder %s27, 1
      %p80 = por %p78, %p79
      %p81 = scmp.ne.s32.totalorder %s72, %s73
      %p82 = scmp.eq.s32.totalorder %s27, 0
      %p83 = por %p81, %p82
      %p84 = scmp.ne.s32.totalorder %s72, %s73
      %p85 = scmp.eq.s32.totalorder %s28, 1
      %p86 = por %p84, %p85
      %p88 = scmp.ne.s32.totalorder %s73, %s87
      %p89 = scmp.eq.s32.totalorder %s28, 0
      %p90 = por %p88, %p89
      %s92 = sadd.s32 %s91, 1
      %p95 = scmp.eq.s32.totalorder %s22, 1
      %p96 = scmp.ne.s32.totalorder %s91, %s93
      %p97 = scmp.eq.s32.totalorder %s22, 0
      %p98 = por %p96, %p97
      %p99 = scmp.ne.s32.totalorder %s91, %s93
      %p100 = scmp.eq.s32.totalorder %s27, 1
      %p101 = por %p99, %p100
      %p102 = scmp.ne.s32.totalorder %s93, %s94
      %p103 = scmp.eq.s32.totalorder %s27, 0
      %p104 = por %p102, %p103
      %p105 = scmp.ne.s32.totalorder %s93, %s94
      %p106 = scmp.eq.s32.totalorder %s28, 1
      %p107 = por %p105, %p106
      %p109 = scmp.ne.s32.totalorder %s94, %s108
      %p110 = scmp.eq.s32.totalorder %s28, 0
      %p111 = por %p109, %p110
      %s112 = ssub.s32 %s29, %s41
      %s113 = ssub.s32 %s30, %s37
      %s114 = sor.u32 %s112, %s113
      %p115 = scmp.eq.s32.totalorder %s114, 0
      %s117 = sadd.s32 %s116, 1
      %s118 = scalar_select %p115, %s116, %s117
      %p121 = pneg %p115
      %p122 = scmp.eq.s32.totalorder %s22, 1
      %p123 = por %p121, %p122
      %p124 = scmp.ne.s32.totalorder %s116, %s119
      %p125 = scmp.eq.s32.totalorder %s22, 0
      %p126 = por %p124, %p125
      %p127 = scmp.ne.s32.totalorder %s116, %s119
      %p128 = scmp.eq.s32.totalorder %s27, 1
      %p129 = por %p127, %p128
      %p130 = scmp.ne.s32.totalorder %s119, %s120
      %p131 = scmp.eq.s32.totalorder %s27, 0
      %p132 = por %p130, %p131
      %p133 = scmp.ne.s32.totalorder %s119, %s120
      %p134 = scmp.eq.s32.totalorder %s28, 1
      %p135 = por %p133, %p134
      %p137 = scmp.ne.s32.totalorder %s120, %s136
      %p138 = scmp.eq.s32.totalorder %s28, 0
      %p139 = por %p137, %p138
      %s140 = ssub.s32 %s29, %s41
      %s141 = ssub.s32 %s30, %s37
      %s142 = sor.u32 %s140, %s141
      %p143 = scmp.eq.s32.totalorder %s142, 0
      %s145 = sadd.s32 %s144, 1
      %s146 = scalar_select %p143, %s144, %s145
      %p149 = pneg %p143
      %p150 = scmp.eq.s32.totalorder %s22, 1
      %p151 = por %p149, %p150
      %p152 = scmp.ne.s32.totalorder %s144, %s147
      %p153 = scmp.eq.s32.totalorder %s22, 0
      %p154 = por %p152, %p153
      %p155 = scmp.ne.s32.totalorder %s144, %s147
      %p156 = scmp.eq.s32.totalorder %s27, 1
      %p157 = por %p155, %p156
      %p158 = scmp.ne.s32.totalorder %s147, %s148
      %p159 = scmp.eq.s32.totalorder %s27, 0
      %p160 = por %p158, %p159
      %p161 = scmp.ne.s32.totalorder %s147, %s148
      %p162 = scmp.eq.s32.totalorder %s28, 1
      %p163 = por %p161, %p162
      %p165 = scmp.ne.s32.totalorder %s148, %s164
      %p166 = scmp.eq.s32.totalorder %s28, 0
      %p167 = por %p165, %p166
      %s168 = ssub.s32 %s29, %s41
      %s169 = ssub.s32 %s30, %s37
      %s170 = sor.u32 %s168, %s169
      %p171 = scmp.eq.s32.totalorder %s170, 0
      %s173 = sadd.s32 %s172, 1
      %s174 = scalar_select %p171, %s172, %s173
      %p177 = pneg %p171
      %p178 = scmp.eq.s32.totalorder %s22, 1
      %p179 = por %p177, %p178
      %p180 = scmp.ne.s32.totalorder %s172, %s175
      %p181 = scmp.eq.s32.totalorder %s22, 0
      %p182 = por %p180, %p181
      %p183 = scmp.ne.s32.totalorder %s172, %s175
      %p184 = scmp.eq.s32.totalorder %s27, 1
      %p185 = por %p183, %p184
      %p186 = scmp.ne.s32.totalorder %s175, %s176
      %p187 = scmp.eq.s32.totalorder %s27, 0
      %p188 = por %p186, %p187
      %p189 = scmp.ne.s32.totalorder %s175, %s176
      %p190 = scmp.eq.s32.totalorder %s28, 1
      %p191 = por %p189, %p190
      %p193 = scmp.ne.s32.totalorder %s176, %s192
      %p194 = scmp.eq.s32.totalorder %s28, 0
      %p195 = por %p193, %p194
      %p196 = scmp.le.s32.totalorder 1, %s22
      %p197 = scmp.lt.s32.totalorder %s22, 3
      %p198 = pnand %p196, %p197
      %p199 = pneg %p198
      // Predicated region
      $region9: #{tpu_custom_call.1} parent=5 // pred_check
        _
      $region10: #{tpu_custom_call.1} parent=5 // pred_check_branch
        %201 = sbr.rel (%p198) target = $region12
      $region11: #{tpu_custom_call.1} parent=5 // pred_region
        %s202 = ssub.s32 %s22, 1
        // Predicated region
        $region13: #{tpu_custom_call.1} parent=11 // pred_check
          %p203 = pneg %p83
        $region14: #{tpu_custom_call.1} parent=11 // pred_check_branch
          %205 = sbr.rel (%p203) target = $region16
        $region15: #{tpu_custom_call.1} parent=11 // pred_region
          %s207 = ssub.s32 256, 256
          %208 = vsyncadd [#allocation6], %s207
          %s209 = sshll.u32 [#allocation5], 4
          %s210 = int_to_ptr.vmem [resolvable:$true] %s209
          %215 = dma.hbm_to_vmem [thread:$0]  %s1, 256, %s210, [#allocation6], 64, 64, 4
        $region16: #{tpu_custom_call.1} parent=11 // pred_fallthru
          _
        // Predicated region
        $region17: #{tpu_custom_call.1} parent=11 // pred_check
          %p216 = pneg %p104
        $region18: #{tpu_custom_call.1} parent=11 // pred_check_branch
          %218 = sbr.rel (%p216) target = $region20
        $region19: #{tpu_custom_call.1} parent=11 // pred_region
          _
        $region20: #{tpu_custom_call.1} parent=11 // pred_fallthru
          _
      $region12: #{tpu_custom_call.1} parent=5 // pred_fallthru
        _
      %p219 = scmp.lt.s32.totalorder %s22, 2
      // Predicated region
      $region21: #{tpu_custom_call.1} parent=5 // pred_check
        %p220 = pneg %p219
      $region22: #{tpu_custom_call.1} parent=5 // pred_check_branch
        %222 = sbr.rel (%p220) target = $region24
      $region23: #{tpu_custom_call.1} parent=5 // pred_region
        // Predicated region
        $region25: #{tpu_custom_call.1} parent=23 // pred_check
          %p223 = pneg %p56
        $region26: #{tpu_custom_call.1} parent=23 // pred_check_branch
          %225 = sbr.rel (%p223) target = $region28
        $region27: #{tpu_custom_call.1} parent=23 // pred_region
          %s226 = sand.u32 %s46, 1
          %s227 = scalar_lea.sflag [#allocation3], %s226
          %s228 = sand.u32 %s46, 1
          %s229 = smul.addr %s228, 8
          %s230 = scalar_lea.vmem [#allocation2], %s229
          %s232 = ssub.s32 128, 128
          %233 = vsyncadd %s227, %s232
          %s234 = sadd.s32 %s30, %s29
          %s235 = smul.addr %s234, 128
          %s236 = scalar_lea.hbm %s0, %s235
          %s238 = sshll.u32 %s230, 4
          %s239 = int_to_ptr.vmem [resolvable:$true] %s238
          %241 = dma.hbm_to_vmem [thread:$0]  %s236, 128, %s239, %s227
        $region28: #{tpu_custom_call.1} parent=23 // pred_fallthru
          _
      $region24: #{tpu_custom_call.1} parent=5 // pred_fallthru
        _
      %p242 = scmp.le.s32.totalorder 1, %s22
      %p243 = scmp.lt.s32.totalorder %s22, 3
      %p244 = pnand %p242, %p243
      %p245 = pneg %p244
      // Predicated region
      $region29: #{tpu_custom_call.1} parent=5 // pred_check
        _
      $region30: #{tpu_custom_call.1} parent=5 // pred_check_branch
        %247 = sbr.rel (%p244) target = $region32
      $region31: #{tpu_custom_call.1} parent=5 // pred_region
        %s248 = ssub.s32 %s22, 1
        %s249 = sand.u32 %s49, 1
        %s250 = scalar_lea.sflag [#allocation3], %s249
        %s251 = sand.u32 %s49, 1
        %s252 = smul.addr %s251, 8
        %s253 = scalar_lea.vmem [#allocation2], %s252
        // Predicated region
        $region33: #{tpu_custom_call.1} parent=31 // pred_check
          %p254 = pneg %p62
        $region34: #{tpu_custom_call.1} parent=31 // pred_check_branch
          %256 = sbr.rel (%p254) target = $region36
        $region35: #{tpu_custom_call.1} parent=31 // pred_region
          %257 = dma.done %s250, 128
        $region36: #{tpu_custom_call.1} parent=31 // pred_fallthru
          _
        // Predicated region
        $region37: #{tpu_custom_call.1} parent=31 // pred_check
          %p258 = pneg %p83
        $region38: #{tpu_custom_call.1} parent=31 // pred_check_branch
          %260 = sbr.rel (%p258) target = $region40
        $region39: #{tpu_custom_call.1} parent=31 // pred_region
          %261 = dma.done [#allocation6], 256
        $region40: #{tpu_custom_call.1} parent=31 // pred_fallthru
          _
        %s262 = sand.u32 %s49, 1
        %s263 = scalar_lea.sflag [#allocation3], %s262
        %s264 = sand.u32 %s49, 1
        %s265 = smul.addr %s264, 8
        %s266 = scalar_lea.vmem [#allocation2], %s265
        %p267 = pneg %p62
        %p268 = pneg %p59
        %p269 = pneg %p83
        %p270 = pneg %p80
        %p271 = pneg %p104
        %p272 = pneg %p101
        %p273 = pneg %p132
        %p274 = pneg %p129
        %s275 = sand.u32 %s119, 1
        %s276 = scalar_lea.sflag [#allocation4], %s275
        %s277 = sand.u32 %s119, 1
        %s278 = smul.addr %s277, 16
        %s279 = scalar_lea.vmem [#allocation7], %s278
        %p280 = pneg %p160
        %p281 = pneg %p157
        %s282 = sand.u32 %s27, 1
        %s283 = scalar_lea.sflag [#allocation9], %s282
        %s284 = sand.u32 %s147, 1
        %s285 = smul.addr %s284, 16
        %s286 = scalar_lea.vmem [#allocation8], %s285
        %p287 = pneg %p188
        %p288 = pneg %p185
        %s289 = sand.u32 %s27, 1
        %s290 = scalar_lea.sflag [#allocation9], %s289
        %s291 = sand.u32 %s175, 1
        %s292 = smul.addr %s291, 16
        %s293 = scalar_lea.vmem [#allocation10], %s292
        %v295 = vld [vmem:[%s253] sm:$0xff]
        %v296 = vpack.c.bf16 %v295, %v295
        %v297 = vld [vmem:[#allocation5] sm:$0xf]
        %v298 = vld [vmem:[#allocation5 + $0x4] sm:$0xf]
        %v299 = vld [vmem:[#allocation5 + $0x8] sm:$0xf]
        %v300 = vld [vmem:[#allocation5 + $0xc] sm:$0xf]
        %v301 = vld [vmem:[%s2] sm:$0x1]
        %v303 = vlaneseq
        %v304 = vshrl.u32 %v303, 7
        %v305 = vsub.s32 0, %v304
        %v306 = vrot.slane %v301, %v305
        %v312 = vunpack.c.l.b16 %v297
        %v313 = vunpack.c.l.b16 %v298
        %v314 = vunpack.c.l.b16 %v299
        %v315 = vunpack.c.l.b16 %v300
        %v316 = vpack.c.b16 %v313, %v312
        %v317 = vpack.c.b16 %v315, %v314
        %vm320 = vcmask 261120
        %v322 = vsel %vm320, %v296, 0
        %324 = vmatprep.subr.bf16.mxu0 0
        %325 = vmatpush1.bf16.msra.mxu0 %v316
        %326 = vmatprep.subr.bf16.mxu0 0
        %327 = vmatpush1.bf16.msra.mxu0 %v317
        %328 = vmatprep.subr.bf16.mxu0 0
        %329 = vmatpush1.bf16.msra.mxu0 0
        %330 = vmatprep.subr.bf16.mxu0 0
        %331 = vmatpush1.bf16.msra.mxu0 0
        %332 = vmatprep.subr.bf16.mxu0 0
        %333 = vmatpush1.bf16.msra.mxu0 0
        %334 = vmatprep.subr.bf16.mxu0 0
        %335 = vmatpush1.bf16.msra.mxu0 0
        %336 = vmatprep.subr.bf16.mxu0 0
        %337 = vmatpush1.bf16.msra.mxu0 0
        %338 = vmatprep.subr.bf16.mxu0 0
        %339 = vmatpush1.bf16.msra.mxu0 0
        %340 = vmatprep.subr.bf16.mxu0 0
        %341 = vmatpush1.bf16.msra.mxu0 0
        %342 = vmatprep.subr.bf16.mxu0 0
        %343 = vmatpush1.bf16.msra.mxu0 0
        %344 = vmatprep.subr.bf16.mxu0 0
        %345 = vmatpush1.bf16.msra.mxu0 0
        %346 = vmatprep.subr.bf16.mxu0 0
        %347 = vmatpush1.bf16.msra.mxu0 0
        %348 = vmatprep.subr.bf16.mxu0 0
        %349 = vmatpush1.bf16.msra.mxu0 0
        %350 = vmatprep.subr.bf16.mxu0 0
        %351 = vmatpush1.bf16.msra.mxu0 0
        %352 = vmatprep.subr.bf16.mxu0 0
        %353 = vmatpush1.bf16.msra.mxu0 0
        %354 = vmatprep.subr.bf16.mxu0 0
        %355 = vmatpush1.bf16.msra.mxu0 0
        %356 = vmatprep.mubr.bf16.mxu0 0
        %357 = vmatmul.mubr.bf16.gmra.mrb[0].mxu0 %v322
        %v358 = vpop.f32.mrb[0].mxu0
        %v359 = vadd.f32 %v306, %v358
        %v360 = vpop.f32.mrb[0].mxu0
        %v361 = vpop.f32.mrb[0].mxu0
        %v362 = vpop.f32.mrb[0].mxu0
        %363 = vdwg.mxu0
        %v364 = vpack.c.bf16 %v359, %v359
        %366 = vrot.lane.b32.xlu0 %v364, 120
        %v367 = vpop.permute.xlu0 %366
        %368 = vrot.lane.b32.xlu0 %v364, 112
        %v369 = vpop.permute.xlu0 %368
        %370 = vrot.lane.b32.xlu0 %v364, 104
        %v371 = vpop.permute.xlu0 %370
        %v373 = vunpack.c.l.s4 1983009808
        %v374 = vunpack.c.0.s8 %v373
        %v375 = vlaneseq
        %v376 = vshrl.u32 %v375, 7
        %v377 = vsub.s32 %v374, %v376
        %v378 = vrot.slane %v364, %v377
        %v381 = vunpack.c.l.s4 1983009808
        %v382 = vunpack.c.0.s8 %v381
        %v383 = vlaneseq
        %v384 = vshrl.u32 %v383, 7
        %v385 = vsub.s32 %v382, %v384
        %v386 = vrot.slane %v369, %v385
        %v387 = vcombine.low %v378, %v386
        %v388 = vcombine.high %v378, %v386
        %v390 = vunpack.c.l.s4 1934713408
        %v391 = vunpack.c.0.s8 %v390
        %v392 = vlaneseq
        %v393 = vshrl.u32 %v392, 7
        %v394 = vsub.s32 %v391, %v393
        %v395 = vrot.slane %v387, %v394
        %v397 = vunpack.c.l.s4 1934713408
        %v398 = vunpack.c.0.s8 %v397
        %v399 = vlaneseq
        %v400 = vshrl.u32 %v399, 7
        %v401 = vsub.s32 %v398, %v400
        %v402 = vrot.slane %v388, %v401
        %v403 = vcombine.high %v395, 0
        %v404 = vcombine.high %v402, 0
        %v407 = vunpack.c.l.s4 1983009808
        %v408 = vunpack.c.0.s8 %v407
        %v409 = vlaneseq
        %v410 = vshrl.u32 %v409, 7
        %v411 = vsub.s32 %v408, %v410
        %v412 = vrot.slane %v367, %v411
        %v415 = vunpack.c.l.s4 1983009808
        %v416 = vunpack.c.0.s8 %v415
        %v417 = vlaneseq
        %v418 = vshrl.u32 %v417, 7
        %v419 = vsub.s32 %v416, %v418
        %v420 = vrot.slane %v371, %v419
        %v421 = vcombine.low %v412, %v420
        %v422 = vcombine.high %v412, %v420
        %v424 = vunpack.c.l.s4 1934713408
        %v425 = vunpack.c.0.s8 %v424
        %v426 = vlaneseq
        %v427 = vshrl.u32 %v426, 7
        %v428 = vsub.s32 %v425, %v427
        %v429 = vrot.slane %v421, %v428
        %v431 = vunpack.c.l.s4 1934713408
        %v432 = vunpack.c.0.s8 %v431
        %v433 = vlaneseq
        %v434 = vshrl.u32 %v433, 7
        %v435 = vsub.s32 %v432, %v434
        %v436 = vrot.slane %v422, %v435
        %v437 = vcombine.high %v429, 0
        %v438 = vcombine.high %v436, 0
        %v441 = vpack.i.b16 %v429, %v395
        %v443 = vshrl.u32 %v395, 16
        %v444 = vshrl.u32 %v429, 16
        %v445 = vpack.i.b16 %v444, %v443
        %v449 = vpack.i.b16 %v437, %v403
        %v451 = vshrl.u32 %v403, 16
        %v452 = vshrl.u32 %v437, 16
        %v453 = vpack.i.b16 %v452, %v451
        %v457 = vpack.i.b16 %v436, %v402
        %v459 = vshrl.u32 %v402, 16
        %v460 = vshrl.u32 %v436, 16
        %v461 = vpack.i.b16 %v460, %v459
        %v465 = vpack.i.b16 %v438, %v404
        %v467 = vshrl.u32 %v404, 16
        %v468 = vshrl.u32 %v438, 16
        %v469 = vpack.i.b16 %v468, %v467
        %v471 = vcombine.low %v441, %v457
        %v473 = vunpack.c.l.s4 1983009808
        %v474 = vunpack.c.0.s8 %v473
        %v475 = vlaneseq
        %v476 = vshrl.u32 %v475, 7
        %v477 = vsub.s32 %v474, %v476
        %v478 = vrot.slane %v471, %v477
        %v479 = vcombine.low %v449, %v465
        %v481 = vunpack.c.l.s4 1983009808
        %v482 = vunpack.c.0.s8 %v481
        %v483 = vlaneseq
        %v484 = vshrl.u32 %v483, 7
        %v485 = vsub.s32 %v482, %v484
        %v486 = vrot.slane %v479, %v485
        %v487 = vcombine.low %v478, %v486
        %v489 = vunpack.c.l.s4 1934713408
        %v490 = vunpack.c.0.s8 %v489
        %v491 = vlaneseq
        %v492 = vshrl.u32 %v491, 7
        %v493 = vsub.s32 %v490, %v492
        %v494 = vrot.slane %v487, %v493
        %v495 = vcombine.high %v494, 0
        %v496 = vcombine.low %v445, %v461
        %v498 = vunpack.c.l.s4 1983009808
        %v499 = vunpack.c.0.s8 %v498
        %v500 = vlaneseq
        %v501 = vshrl.u32 %v500, 7
        %v502 = vsub.s32 %v499, %v501
        %v503 = vrot.slane %v496, %v502
        %v504 = vcombine.low %v453, %v469
        %v506 = vunpack.c.l.s4 1983009808
        %v507 = vunpack.c.0.s8 %v506
        %v508 = vlaneseq
        %v509 = vshrl.u32 %v508, 7
        %v510 = vsub.s32 %v507, %v509
        %v511 = vrot.slane %v504, %v510
        %v512 = vcombine.low %v503, %v511
        %v514 = vunpack.c.l.s4 1934713408
        %v515 = vunpack.c.0.s8 %v514
        %v516 = vlaneseq
        %v517 = vshrl.u32 %v516, 7
        %v518 = vsub.s32 %v515, %v517
        %v519 = vrot.slane %v512, %v518
        %v520 = vcombine.high %v519, 0
        %v523 = vpack.i.b16 %v519, %v494
        %v525 = vshrl.u32 %v494, 16
        %v526 = vshrl.u32 %v519, 16
        %v527 = vpack.i.b16 %v526, %v525
        %v531 = vpack.i.b16 %v520, %v495
        %v533 = vshrl.u32 %v495, 16
        %v534 = vshrl.u32 %v520, 16
        %v535 = vpack.i.b16 %v534, %v533
        %vm537 = vcmask 60416
        %538 = vst.msk [vmem:[%s279] sm:$0xf] %vm537, %v523
        %539 = vst.msk [vmem:[%s279 + $0x4] sm:$0xf] %vm537, %v527
        %540 = vst.msk [vmem:[%s279 + $0x8] sm:$0xf] %vm537, %v531
        %541 = vst.msk [vmem:[%s279 + $0xc] sm:$0xf] %vm537, %v535
        %542 = vrot.lane.b32.xlu0 %v364, 64
        %v543 = vpop.permute.xlu0 %542
        %544 = vrot.lane.b32.xlu0 %v367, 64
        %v545 = vpop.permute.xlu0 %544
        %546 = vrot.lane.b32.xlu0 %v369, 64
        %v547 = vpop.permute.xlu0 %546
        %548 = vrot.lane.b32.xlu0 %v371, 64
        %v549 = vpop.permute.xlu0 %548
        %v552 = vunpack.c.l.s4 1983009808
        %v553 = vunpack.c.0.s8 %v552
        %v554 = vlaneseq
        %v555 = vshrl.u32 %v554, 7
        %v556 = vsub.s32 %v553, %v555
        %v557 = vrot.slane %v543, %v556
        %v560 = vunpack.c.l.s4 1983009808
        %v561 = vunpack.c.0.s8 %v560
        %v562 = vlaneseq
        %v563 = vshrl.u32 %v562, 7
        %v564 = vsub.s32 %v561, %v563
        %v565 = vrot.slane %v547, %v564
        %v566 = vcombine.low %v557, %v565
        %v567 = vcombine.high %v557, %v565
        %v569 = vunpack.c.l.s4 1934713408
        %v570 = vunpack.c.0.s8 %v569
        %v571 = vlaneseq
        %v572 = vshrl.u32 %v571, 7
        %v573 = vsub.s32 %v570, %v572
        %v574 = vrot.slane %v566, %v573
        %v576 = vunpack.c.l.s4 1934713408
        %v577 = vunpack.c.0.s8 %v576
        %v578 = vlaneseq
        %v579 = vshrl.u32 %v578, 7
        %v580 = vsub.s32 %v577, %v579
        %v581 = vrot.slane %v567, %v580
        %v582 = vcombine.high %v574, 0
        %v583 = vcombine.high %v581, 0
        %v586 = vunpack.c.l.s4 1983009808
        %v587 = vunpack.c.0.s8 %v586
        %v588 = vlaneseq
        %v589 = vshrl.u32 %v588, 7
        %v590 = vsub.s32 %v587, %v589
        %v591 = vrot.slane %v545, %v590
        %v594 = vunpack.c.l.s4 1983009808
        %v595 = vunpack.c.0.s8 %v594
        %v596 = vlaneseq
        %v597 = vshrl.u32 %v596, 7
        %v598 = vsub.s32 %v595, %v597
        %v599 = vrot.slane %v549, %v598
        %v600 = vcombine.low %v591, %v599
        %v601 = vcombine.high %v591, %v599
        %v603 = vunpack.c.l.s4 1934713408
        %v604 = vunpack.c.0.s8 %v603
        %v605 = vlaneseq
        %v606 = vshrl.u32 %v605, 7
        %v607 = vsub.s32 %v604, %v606
        %v608 = vrot.slane %v600, %v607
        %v610 = vunpack.c.l.s4 1934713408
        %v611 = vunpack.c.0.s8 %v610
        %v612 = vlaneseq
        %v613 = vshrl.u32 %v612, 7
        %v614 = vsub.s32 %v611, %v613
        %v615 = vrot.slane %v601, %v614
        %v616 = vcombine.high %v608, 0
        %v617 = vcombine.high %v615, 0
        %v620 = vpack.i.b16 %v608, %v574
        %v622 = vshrl.u32 %v574, 16
        %v623 = vshrl.u32 %v608, 16
        %v624 = vpack.i.b16 %v623, %v622
        %v628 = vpack.i.b16 %v616, %v582
        %v630 = vshrl.u32 %v582, 16
        %v631 = vshrl.u32 %v616, 16
        %v632 = vpack.i.b16 %v631, %v630
        %v636 = vpack.i.b16 %v615, %v581
        %v638 = vshrl.u32 %v581, 16
        %v639 = vshrl.u32 %v615, 16
        %v640 = vpack.i.b16 %v639, %v638
        %v644 = vpack.i.b16 %v617, %v583
        %v646 = vshrl.u32 %v583, 16
        %v647 = vshrl.u32 %v617, 16
        %v648 = vpack.i.b16 %v647, %v646
        %v650 = vcombine.low %v620, %v636
        %v652 = vunpack.c.l.s4 1983009808
        %v653 = vunpack.c.0.s8 %v652
        %v654 = vlaneseq
        %v655 = vshrl.u32 %v654, 7
        %v656 = vsub.s32 %v653, %v655
        %v657 = vrot.slane %v650, %v656
        %v658 = vcombine.low %v628, %v644
        %v660 = vunpack.c.l.s4 1983009808
        %v661 = vunpack.c.0.s8 %v660
        %v662 = vlaneseq
        %v663 = vshrl.u32 %v662, 7
        %v664 = vsub.s32 %v661, %v663
        %v665 = vrot.slane %v658, %v664
        %v666 = vcombine.low %v657, %v665
        %v668 = vunpack.c.l.s4 1934713408
        %v669 = vunpack.c.0.s8 %v668
        %v670 = vlaneseq
        %v671 = vshrl.u32 %v670, 7
        %v672 = vsub.s32 %v669, %v671
        %v673 = vrot.slane %v666, %v672
        %v674 = vcombine.high %v673, 0
        %v675 = vcombine.low %v624, %v640
        %v677 = vunpack.c.l.s4 1983009808
        %v678 = vunpack.c.0.s8 %v677
        %v679 = vlaneseq
        %v680 = vshrl.u32 %v679, 7
        %v681 = vsub.s32 %v678, %v680
        %v682 = vrot.slane %v675, %v681
        %v683 = vcombine.low %v632, %v648
        %v685 = vunpack.c.l.s4 1983009808
        %v686 = vunpack.c.0.s8 %v685
        %v687 = vlaneseq
        %v688 = vshrl.u32 %v687, 7
        %v689 = vsub.s32 %v686, %v688
        %v690 = vrot.slane %v683, %v689
        %v691 = vcombine.low %v682, %v690
        %v693 = vunpack.c.l.s4 1934713408
        %v694 = vunpack.c.0.s8 %v693
        %v695 = vlaneseq
        %v696 = vshrl.u32 %v695, 7
        %v697 = vsub.s32 %v694, %v696
        %v698 = vrot.slane %v691, %v697
        %v699 = vcombine.high %v698, 0
        %v702 = vpack.i.b16 %v698, %v673
        %v704 = vshrl.u32 %v673, 16
        %v705 = vshrl.u32 %v698, 16
        %v706 = vpack.i.b16 %v705, %v704
        %v710 = vpack.i.b16 %v699, %v674
        %v712 = vshrl.u32 %v674, 16
        %v713 = vshrl.u32 %v699, 16
        %v714 = vpack.i.b16 %v713, %v712
        %716 = vst.msk [vmem:[%s293] sm:$0xf] %vm537, %v702
        %717 = vst.msk [vmem:[%s293 + $0x4] sm:$0xf] %vm537, %v706
        %718 = vst.msk [vmem:[%s293 + $0x8] sm:$0xf] %vm537, %v710
        %719 = vst.msk [vmem:[%s293 + $0xc] sm:$0xf] %vm537, %v714
        %720 = vrot.lane.b32.xlu0 %v364, 96
        %v721 = vpop.permute.xlu0 %720
        %722 = vrot.lane.b32.xlu0 %v367, 96
        %v723 = vpop.permute.xlu0 %722
        %724 = vrot.lane.b32.xlu0 %v369, 96
        %v725 = vpop.permute.xlu0 %724
        %726 = vrot.lane.b32.xlu0 %v371, 96
        %v727 = vpop.permute.xlu0 %726
        %v730 = vunpack.c.l.s4 1983009808
        %v731 = vunpack.c.0.s8 %v730
        %v732 = vlaneseq
        %v733 = vshrl.u32 %v732, 7
        %v734 = vsub.s32 %v731, %v733
        %v735 = vrot.slane %v721, %v734
        %v738 = vunpack.c.l.s4 1983009808
        %v739 = vunpack.c.0.s8 %v738
        %v740 = vlaneseq
        %v741 = vshrl.u32 %v740, 7
        %v742 = vsub.s32 %v739, %v741
        %v743 = vrot.slane %v725, %v742
        %v744 = vcombine.low %v735, %v743
        %v745 = vcombine.high %v735, %v743
        %v747 = vunpack.c.l.s4 1934713408
        %v748 = vunpack.c.0.s8 %v747
        %v749 = vlaneseq
        %v750 = vshrl.u32 %v749, 7
        %v751 = vsub.s32 %v748, %v750
        %v752 = vrot.slane %v744, %v751
        %v754 = vunpack.c.l.s4 1934713408
        %v755 = vunpack.c.0.s8 %v754
        %v756 = vlaneseq
        %v757 = vshrl.u32 %v756, 7
        %v758 = vsub.s32 %v755, %v757
        %v759 = vrot.slane %v745, %v758
        %v760 = vcombine.high %v752, 0
        %v761 = vcombine.high %v759, 0
        %v764 = vunpack.c.l.s4 1983009808
        %v765 = vunpack.c.0.s8 %v764
        %v766 = vlaneseq
        %v767 = vshrl.u32 %v766, 7
        %v768 = vsub.s32 %v765, %v767
        %v769 = vrot.slane %v723, %v768
        %v772 = vunpack.c.l.s4 1983009808
        %v773 = vunpack.c.0.s8 %v772
        %v774 = vlaneseq
        %v775 = vshrl.u32 %v774, 7
        %v776 = vsub.s32 %v773, %v775
        %v777 = vrot.slane %v727, %v776
        %v778 = vcombine.low %v769, %v777
        %v779 = vcombine.high %v769, %v777
        %v781 = vunpack.c.l.s4 1934713408
        %v782 = vunpack.c.0.s8 %v781
        %v783 = vlaneseq
        %v784 = vshrl.u32 %v783, 7
        %v785 = vsub.s32 %v782, %v784
        %v786 = vrot.slane %v778, %v785
        %v788 = vunpack.c.l.s4 1934713408
        %v789 = vunpack.c.0.s8 %v788
        %v790 = vlaneseq
        %v791 = vshrl.u32 %v790, 7
        %v792 = vsub.s32 %v789, %v791
        %v793 = vrot.slane %v779, %v792
        %v794 = vcombine.high %v786, 0
        %v795 = vcombine.high %v793, 0
        %v798 = vpack.i.b16 %v786, %v752
        %v800 = vshrl.u32 %v752, 16
        %v801 = vshrl.u32 %v786, 16
        %v802 = vpack.i.b16 %v801, %v800
        %v806 = vpack.i.b16 %v794, %v760
        %v808 = vshrl.u32 %v760, 16
        %v809 = vshrl.u32 %v794, 16
        %v810 = vpack.i.b16 %v809, %v808
        %v814 = vpack.i.b16 %v793, %v759
        %v816 = vshrl.u32 %v759, 16
        %v817 = vshrl.u32 %v793, 16
        %v818 = vpack.i.b16 %v817, %v816
        %v822 = vpack.i.b16 %v795, %v761
        %v824 = vshrl.u32 %v761, 16
        %v825 = vshrl.u32 %v795, 16
        %v826 = vpack.i.b16 %v825, %v824
        %v828 = vcombine.low %v798, %v814
        %v830 = vunpack.c.l.s4 1983009808
        %v831 = vunpack.c.0.s8 %v830
        %v832 = vlaneseq
        %v833 = vshrl.u32 %v832, 7
        %v834 = vsub.s32 %v831, %v833
        %v835 = vrot.slane %v828, %v834
        %v836 = vcombine.low %v806, %v822
        %v838 = vunpack.c.l.s4 1983009808
        %v839 = vunpack.c.0.s8 %v838
        %v840 = vlaneseq
        %v841 = vshrl.u32 %v840, 7
        %v842 = vsub.s32 %v839, %v841
        %v843 = vrot.slane %v836, %v842
        %v844 = vcombine.low %v835, %v843
        %v846 = vunpack.c.l.s4 1934713408
        %v847 = vunpack.c.0.s8 %v846
        %v848 = vlaneseq
        %v849 = vshrl.u32 %v848, 7
        %v850 = vsub.s32 %v847, %v849
        %v851 = vrot.slane %v844, %v850
        %v852 = vcombine.high %v851, 0
        %v853 = vcombine.low %v802, %v818
        %v855 = vunpack.c.l.s4 1983009808
        %v856 = vunpack.c.0.s8 %v855
        %v857 = vlaneseq
        %v858 = vshrl.u32 %v857, 7
        %v859 = vsub.s32 %v856, %v858
        %v860 = vrot.slane %v853, %v859
        %v861 = vcombine.low %v810, %v826
        %v863 = vunpack.c.l.s4 1983009808
        %v864 = vunpack.c.0.s8 %v863
        %v865 = vlaneseq
        %v866 = vshrl.u32 %v865, 7
        %v867 = vsub.s32 %v864, %v866
        %v868 = vrot.slane %v861, %v867
        %v869 = vcombine.low %v860, %v868
        %v871 = vunpack.c.l.s4 1934713408
        %v872 = vunpack.c.0.s8 %v871
        %v873 = vlaneseq
        %v874 = vshrl.u32 %v873, 7
        %v875 = vsub.s32 %v872, %v874
        %v876 = vrot.slane %v869, %v875
        %v877 = vcombine.high %v876, 0
        %v880 = vpack.i.b16 %v876, %v851
        %v882 = vshrl.u32 %v851, 16
        %v883 = vshrl.u32 %v876, 16
        %v884 = vpack.i.b16 %v883, %v882
        %v888 = vpack.i.b16 %v877, %v852
        %v890 = vshrl.u32 %v852, 16
        %v891 = vshrl.u32 %v877, 16
        %v892 = vpack.i.b16 %v891, %v890
        %894 = vxpose.xlu0.c.b16.start [1/8] %v880, 128
        %895 = vxpose.xlu0.c.b16.cont [2/8] 0, 128
        %896 = vxpose.xlu0.c.b16.cont [3/8] 0, 128
        %897 = vxpose.xlu0.c.b16.cont [4/8] 0, 128
        %898 = vxpose.xlu0.c.b16.cont [5/8] 0, 128
        %899 = vxpose.xlu0.c.b16.cont [6/8] 0, 128
        %900 = vxpose.xlu0.c.b16.cont [7/8] 0, 128
        %901 = vxpose.xlu0.c.b16.end [8/8] 0, 128
        %v902 = vpop.trf.xlu0
        %v903 = vpop.trf.xlu0
        %v904 = vpop.trf.xlu0
        %v905 = vpop.trf.xlu0
        %v906 = vpop.trf.xlu0
        %v907 = vpop.trf.xlu0
        %v908 = vpop.trf.xlu0
        %v909 = vpop.trf.xlu0
        %910 = vxpose.xlu0.c.b16.start [1/8] %v884, 128
        %911 = vxpose.xlu0.c.b16.cont [2/8] 0, 128
        %912 = vxpose.xlu0.c.b16.cont [3/8] 0, 128
        %913 = vxpose.xlu0.c.b16.cont [4/8] 0, 128
        %914 = vxpose.xlu0.c.b16.cont [5/8] 0, 128
        %915 = vxpose.xlu0.c.b16.cont [6/8] 0, 128
        %916 = vxpose.xlu0.c.b16.cont [7/8] 0, 128
        %917 = vxpose.xlu0.c.b16.end [8/8] 0, 128
        %v918 = vpop.trf.xlu0
        %v919 = vpop.trf.xlu0
        %v920 = vpop.trf.xlu0
        %v921 = vpop.trf.xlu0
        %v922 = vpop.trf.xlu0
        %v923 = vpop.trf.xlu0
        %v924 = vpop.trf.xlu0
        %v925 = vpop.trf.xlu0
        %926 = vxpose.xlu0.c.b16.start [1/8] %v888, 128
        %927 = vxpose.xlu0.c.b16.cont [2/8] 0, 128
        %928 = vxpose.xlu0.c.b16.cont [3/8] 0, 128
        %929 = vxpose.xlu0.c.b16.cont [4/8] 0, 128
        %930 = vxpose.xlu0.c.b16.cont [5/8] 0, 128
        %931 = vxpose.xlu0.c.b16.cont [6/8] 0, 128
        %932 = vxpose.xlu0.c.b16.cont [7/8] 0, 128
        %933 = vxpose.xlu0.c.b16.end [8/8] 0, 128
        %v934 = vpop.trf.xlu0
        %v935 = vpop.trf.xlu0
        %v936 = vpop.trf.xlu0
        %v937 = vpop.trf.xlu0
        %v938 = vpop.trf.xlu0
        %v939 = vpop.trf.xlu0
        %v940 = vpop.trf.xlu0
        %v941 = vpop.trf.xlu0
        %942 = vxpose.xlu0.c.b16.start [1/8] %v892, 128
        %943 = vxpose.xlu0.c.b16.cont [2/8] 0, 128
        %944 = vxpose.xlu0.c.b16.cont [3/8] 0, 128
        %945 = vxpose.xlu0.c.b16.cont [4/8] 0, 128
        %946 = vxpose.xlu0.c.b16.cont [5/8] 0, 128
        %947 = vxpose.xlu0.c.b16.cont [6/8] 0, 128
        %948 = vxpose.xlu0.c.b16.cont [7/8] 0, 128
        %949 = vxpose.xlu0.c.b16.end [8/8] 0, 128
        %v950 = vpop.trf.xlu0
        %v951 = vpop.trf.xlu0
        %v952 = vpop.trf.xlu0
        %v953 = vpop.trf.xlu0
        %v954 = vpop.trf.xlu0
        %v955 = vpop.trf.xlu0
        %v956 = vpop.trf.xlu0
        %v957 = vpop.trf.xlu0
        %958 = vst.msk [vmem:[%s286] sm:$0xf] %vm537, %v902
        %959 = vst.msk [vmem:[%s286 + $0x4] sm:$0xf] %vm537, %v918
        %960 = vst.msk [vmem:[%s286 + $0x8] sm:$0xf] %vm537, %v934
        %961 = vst.msk [vmem:[%s286 + $0xc] sm:$0xf] %vm537, %v950
        %s962 = sand.u32 %s119, 1
        %s963 = scalar_lea.sflag [#allocation4], %s962
        %s964 = sand.u32 %s119, 1
        %s965 = smul.addr %s964, 16
        %s966 = scalar_lea.vmem [#allocation7], %s965
        %s967 = sand.u32 %s27, 1
        %s968 = scalar_lea.sflag [#allocation9], %s967
        %s969 = sand.u32 %s147, 1
        %s970 = smul.addr %s969, 16
        %s971 = scalar_lea.vmem [#allocation8], %s970
        %s972 = sand.u32 %s27, 1
        %s973 = scalar_lea.sflag [#allocation9], %s972
        %s974 = sand.u32 %s175, 1
        %s975 = smul.addr %s974, 16
        %s976 = scalar_lea.vmem [#allocation10], %s975
        // Predicated region
        $region41: #{tpu_custom_call.1} parent=31 // pred_check
          %p977 = pneg %p129
        $region42: #{tpu_custom_call.1} parent=31 // pred_check_branch
          %979 = sbr.rel (%p977) target = $region44
        $region43: #{tpu_custom_call.1} parent=31 // pred_region
          %s981 = ssub.s32 256, 256
          %982 = vsyncadd %s963, %s981
          %s983 = smul.addr %s31, 4
          %s984 = sadd.s32 %s32, %s983
          %s985 = smul.addr %s984, 64
          %s986 = scalar_lea.hbm %s3, %s985
          %s987 = sshll.u32 %s966, 4
          %s988 = int_to_ptr.vmem [resolvable:$true] %s987
          %993 = dma.vmem_to_hbm [thread:$0]  %s988, 256, %s986, %s963, 64, 64, 4
        $region44: #{tpu_custom_call.1} parent=31 // pred_fallthru
          _
        // Predicated region
        $region45: #{tpu_custom_call.1} parent=31 // pred_check
          %p994 = pneg %p157
        $region46: #{tpu_custom_call.1} parent=31 // pred_check_branch
          %996 = sbr.rel (%p994) target = $region48
        $region47: #{tpu_custom_call.1} parent=31 // pred_region
          %s998 = ssub.s32 256, 256
          %999 = vsyncadd %s968, %s998
          %s1000 = smul.addr %s31, 4
          %s1001 = sadd.s32 %s32, %s1000
          %s1002 = smul.addr %s1001, 64
          %s1003 = scalar_lea.hbm %s4, %s1002
          %s1004 = sshll.u32 %s971, 4
          %s1005 = int_to_ptr.vmem [resolvable:$true] %s1004
          %1010 = dma.vmem_to_hbm [thread:$0]  %s1005, 256, %s1003, %s968, 64, 64, 4
        $region48: #{tpu_custom_call.1} parent=31 // pred_fallthru
          _
        // Predicated region
        $region49: #{tpu_custom_call.1} parent=31 // pred_check
          %p1011 = pneg %p185
        $region50: #{tpu_custom_call.1} parent=31 // pred_check_branch
          %1013 = sbr.rel (%p1011) target = $region52
        $region51: #{tpu_custom_call.1} parent=31 // pred_region
          %s1015 = ssub.s32 256, 256
          %1016 = vsyncadd %s973, %s1015
          %s1017 = smul.addr %s31, 4
          %s1018 = sadd.s32 %s32, %s1017
          %s1019 = smul.addr %s1018, 64
          %s1020 = scalar_lea.hbm %s5, %s1019
          %s1021 = sshll.u32 %s976, 4
          %s1022 = int_to_ptr.vmem [resolvable:$true] %s1021
          %1027 = dma.vmem_to_hbm [thread:$0]  %s1022, 256, %s1020, %s973, 64, 64, 4
        $region52: #{tpu_custom_call.1} parent=31 // pred_fallthru
          _
      $region32: #{tpu_custom_call.1} parent=5 // pred_fallthru
        _
      %p1028 = scmp.le.s32.totalorder 2, %s22
      // Predicated region
      $region53: #{tpu_custom_call.1} parent=5 // pred_check
        %p1029 = pneg %p1028
      $region54: #{tpu_custom_call.1} parent=5 // pred_check_branch
        %1031 = sbr.rel (%p1029) target = $region56
      $region55: #{tpu_custom_call.1} parent=5 // pred_region
        %s1032 = ssub.s32 %s22, 2
        // Predicated region
        $region57: #{tpu_custom_call.1} parent=55 // pred_check
          %p1033 = pneg %p135
        $region58: #{tpu_custom_call.1} parent=55 // pred_check_branch
          %1035 = sbr.rel (%p1033) target = $region60
        $region59: #{tpu_custom_call.1} parent=55 // pred_region
          %s1036 = sand.u32 %s120, 1
          %s1037 = scalar_lea.sflag [#allocation4], %s1036
          %s1038 = sand.u32 %s120, 1
          %s1039 = smul.addr %s1038, 16
          %s1040 = scalar_lea.vmem [#allocation7], %s1039
          %1041 = dma.done %s1037, 256
        $region60: #{tpu_custom_call.1} parent=55 // pred_fallthru
          _
        // Predicated region
        $region61: #{tpu_custom_call.1} parent=55 // pred_check
          %p1042 = pneg %p163
        $region62: #{tpu_custom_call.1} parent=55 // pred_check_branch
          %1044 = sbr.rel (%p1042) target = $region64
        $region63: #{tpu_custom_call.1} parent=55 // pred_region
          %s1045 = sand.u32 %s28, 1
          %s1046 = scalar_lea.sflag [#allocation9], %s1045
          %s1047 = sand.u32 %s148, 1
          %s1048 = smul.addr %s1047, 16
          %s1049 = scalar_lea.vmem [#allocation8], %s1048
          %1050 = dma.done %s1046, 256
        $region64: #{tpu_custom_call.1} parent=55 // pred_fallthru
          _
        // Predicated region
        $region65: #{tpu_custom_call.1} parent=55 // pred_check
          %p1051 = pneg %p191
        $region66: #{tpu_custom_call.1} parent=55 // pred_check_branch
          %1053 = sbr.rel (%p1051) target = $region68
        $region67: #{tpu_custom_call.1} parent=55 // pred_region
          %s1054 = sand.u32 %s28, 1
          %s1055 = scalar_lea.sflag [#allocation9], %s1054
          %s1056 = sand.u32 %s176, 1
          %s1057 = smul.addr %s1056, 16
          %s1058 = scalar_lea.vmem [#allocation10], %s1057
          %1059 = dma.done %s1055, 256
        $region68: #{tpu_custom_call.1} parent=55 // pred_fallthru
          _
      $region56: #{tpu_custom_call.1} parent=5 // pred_fallthru
        _
    $region6: #{tpu_custom_call.1} parent=1 // loop_footer
      %s26 = sadd.s32 1, %s22
    $region7: #{tpu_custom_call.1} parent=1 // loop_footer_branch
      %21 = sbr.rel target = $region3
    $region8: #{tpu_custom_call.1} parent=1 // loop_exit
      _
    %1060 = vsyncpa [#allocation3], 1
    %s1061 = scalar_lea.sflag [#allocation3], 1
    %1062 = vsyncpa %s1061, 1
    %1063 = vsyncpa [#allocation6], 1
    %1064 = vsyncpa [#allocation4], 1
    %s1065 = scalar_lea.sflag [#allocation4], 1
    %1066 = vsyncpa %s1065, 1
    %1067 = vsyncpa [#allocation9], 1
    %s1068 = scalar_lea.sflag [#allocation9], 1
    %1069 = vsyncpa %s1068, 1

</llo_original>
